<compile_context>
chip_gen: v7x
topology: tpu7x:2x2x1
jax: 0.10.0
libtpu: 0.0.40
codegen_flags: <defaults>
</compile_context>

<pallas_src>
import functools

import jax
import jax.numpy as jnp
from jax.experimental import pallas as pl
from jax.experimental.pallas import tpu as pltpu

LANES = 128
SUBLANES = 8
TILE_N = 128          # row tile for streaming A_hat HBM -> VMEM


def _round_up(v, m):
    return (v + m - 1) // m * m


def _pad2(x, rows, cols):
    r, c = x.shape
    return jnp.zeros((rows, cols), x.dtype).at[:r, :c].set(x)


# ----------------------------- Pallas kernel -------------------------------

def _gcn_fused_kernel(num_tiles, a_hbm, x_ref, w1_ref, b1_ref, w2_ref, b2_ref,
                      w3_ref, b3_ref, pa_ref, wl_ref, bl_ref, o_ref,
                      a_vmem, sems):
    """H1 = relu(A (X W1) + b1); H2 = relu(A (H1 W2) + b2);
    pooled = PA (H2 W3) + b3_eff; out = pooled W_lin + b_lin."""
    # Kick off all row-tile DMAs of A_hat (HBM -> persistent VMEM scratch).
    for t in range(num_tiles):
        pltpu.make_async_copy(a_hbm.at[pl.ds(t * TILE_N, TILE_N), :],
                              a_vmem.at[pl.ds(t * TILE_N, TILE_N), :],
                              sems.at[t]).start()

    # Layer-1 feature transform (independent of A) overlaps the A DMA.
    hw1 = jnp.dot(x_ref[...], w1_ref[...],
                  preferred_element_type=jnp.float32).astype(jnp.bfloat16)

    # Layer-1 aggregation, one row tile at a time as tiles land.
    rows = []
    for t in range(num_tiles):
        pltpu.make_async_copy(a_hbm.at[pl.ds(t * TILE_N, TILE_N), :],
                              a_vmem.at[pl.ds(t * TILE_N, TILE_N), :],
                              sems.at[t]).wait()
        a_t = a_vmem[pl.ds(t * TILE_N, TILE_N), :]
        rows.append(jnp.maximum(
            jnp.dot(a_t, hw1, preferred_element_type=jnp.float32)
            + b1_ref[...], 0.0))
    h = jnp.concatenate(rows, axis=0) if num_tiles > 1 else rows[0]

    a = a_vmem[...]                       # fully resident for layer 2

    # Layer 2.
    hw2 = jnp.dot(h.astype(jnp.bfloat16), w2_ref[...],
                  preferred_element_type=jnp.float32).astype(jnp.bfloat16)
    h = jnp.maximum(
        jnp.dot(a, hw2, preferred_element_type=jnp.float32) + b2_ref[...], 0.0)

    # Layer 3 folded with global_mean_pool: conv3 has no ReLU, so
    #   P @ (A (H W3) + b3) == (P A) @ (H W3) + rowsum(P) * b3   (exact).
    hw3 = jnp.dot(h.astype(jnp.bfloat16), w3_ref[...],
                  preferred_element_type=jnp.float32)
    pooled = jnp.dot(pa_ref[...], hw3,
                     preferred_element_type=jnp.float32) + b3_ref[...]

    # TODO(synk): nn.Dropout() is identity in eval mode; training-mode dropout
    # (pltpu.prng_random_bits masking) is not applied.
    out = jnp.dot(pooled, wl_ref[...],
                  preferred_element_type=jnp.float32) + bl_ref[...]
    o_ref[...] = out.astype(o_ref.dtype)


# ------------------------------ Glue (plain JAX) ----------------------------

def normalized_adjacency(edge_index, num_nodes):
    """Dense A_hat matching PyG GCNConv gcn_norm (edge_weight=None).

    Duplicate (non-self-loop) edges accumulate; existing self-loops collapse
    to a single weight-1 self-loop per node (add_remaining_self_loops with
    unit weights).  Symmetric D^-1/2 (A+I) D^-1/2 normalization with degrees
    over targets (rows of the dense A[target, source])."""
    src, dst = edge_index[0], edge_index[1]
    not_self = (src != dst).astype(jnp.float32)
    a = jnp.zeros((num_nodes, num_nodes), jnp.float32)
    a = a.at[dst, src].add(not_self)
    a = a + jnp.eye(num_nodes, dtype=jnp.float32)
    deg = jnp.sum(a, axis=1)
    dinv = jnp.where(deg > 0, jax.lax.rsqrt(deg), 0.0)
    return dinv[:, None] * a * dinv[None, :]


def mean_pool_matrix(batch, num_graphs, num_nodes):
    """P[g, i] = 1/|{j: batch[j]==g}| if batch[i]==g else 0."""
    onehot = (batch[None, :] == jnp.arange(num_graphs)[:, None]).astype(jnp.float32)
    counts = jnp.maximum(jnp.sum(onehot, axis=1, keepdims=True), 1.0)
    return onehot / counts


def init_params(key, in_channels, hidden_channels, out_channels):
    ks = jax.random.split(key, 4)

    def glorot(k, fan_in, fan_out):
        lim = jnp.sqrt(6.0 / (fan_in + fan_out))
        return jax.random.uniform(k, (fan_in, fan_out), jnp.float32, -lim, lim)

    return {
        "w1": glorot(ks[0], in_channels, hidden_channels),
        "b1": jnp.zeros((1, hidden_channels), jnp.float32),
        "w2": glorot(ks[1], hidden_channels, hidden_channels),
        "b2": jnp.zeros((1, hidden_channels), jnp.float32),
        "w3": glorot(ks[2], hidden_channels, hidden_channels),
        "b3": jnp.zeros((1, hidden_channels), jnp.float32),
        # nn.Linear(hidden, out): stored transposed as [hidden, out]
        "w_lin": glorot(ks[3], hidden_channels, out_channels),
        "b_lin": jnp.zeros((1, out_channels), jnp.float32),
    }


def _vmem_cap_bytes():
    """Physical VMEM for this generation (v5e/v6e: 128 MiB, v7x: 64 MiB)."""
    try:
        cap = getattr(pltpu.get_tpu_info(), "vmem_capacity_bytes", None)
        if cap:
            return int(cap)
    except Exception:
        pass
    return 64 << 20


@functools.partial(jax.jit, static_argnames=("num_graphs",))
def gcn_forward(params, x, edge_index, batch, num_graphs):
    n, c_in = x.shape
    hidden = params["w1"].shape[1]
    c_out = params["w_lin"].shape[1]

    cp = _round_up(max(c_in, hidden, c_out), LANES)     # lane-dense channels
    n_pad = _round_up(n, max(LANES, TILE_N))            # lane-dense bf16 A / PA
    g_pad = _round_up(num_graphs, SUBLANES)
    num_tiles = n_pad // TILE_N

    a_full = normalized_adjacency(edge_index, n)                       # f32 [N,N]
    a_pad = _pad2(a_full, n_pad, n_pad).astype(jnp.bfloat16)           # bf16 [Np,Np]

    p = mean_pool_matrix(batch, num_graphs, n)                         # f32 [G,N]
    p_pad = _pad2(p, g_pad, n_pad)
    pa = _pad2(jnp.dot(p, a_full), g_pad, n_pad)                       # P @ A, f32
    row_sum = jnp.sum(p_pad, axis=1, keepdims=True)                    # [Gp,1]

    x_pad = _pad2(x, n_pad, cp).astype(jnp.bfloat16)
    w1 = _pad2(params["w1"], cp, cp).astype(jnp.bfloat16)
    b1 = _pad2(params["b1"], 1, cp)
    w2 = _pad2(params["w2"], cp, cp).astype(jnp.bfloat16)
    b2 = _pad2(params["b2"], 1, cp)
    w3 = _pad2(params["w3"], cp, cp).astype(jnp.bfloat16)
    b3_eff = row_sum * _pad2(params["b3"], 1, cp)                      # [Gp,cp]
    wl = _pad2(params["w_lin"], cp, cp)
    bl = _pad2(params["b_lin"], 1, cp)

    ins = (a_pad, x_pad, w1, b1, w2, b2, w3, b3_eff, pa, wl, bl)

    # Scoped VMEM budget: actual need (A scratch + VMEM-resident inputs +
    # intermediates) with headroom, capped at physical capacity - 16 MiB.
    need = int(a_pad.size) * a_pad.dtype.itemsize                      # A scratch
    need += sum(int(t.size) * t.dtype.itemsize for t in ins[1:])
    need += g_pad * cp * 4 + 4 * n_pad * cp * 4                        # out + temps
    cap = _vmem_cap_bytes()
    vmem_limit = int(min(max(2 * need, 16 << 20), cap - (16 << 20)))

    out_pad = pl.pallas_call(
        functools.partial(_gcn_fused_kernel, num_tiles),
        out_shape=jax.ShapeDtypeStruct((g_pad, cp), jnp.float32),
        in_specs=[pl.BlockSpec(memory_space=pl.ANY)]                   # A stays in HBM
                 + [pl.BlockSpec(memory_space=pltpu.MemorySpace.VMEM)] * (len(ins) - 1),
        out_specs=pl.BlockSpec(memory_space=pltpu.MemorySpace.VMEM),
        scratch_shapes=[pltpu.VMEM((n_pad, n_pad), jnp.bfloat16),      # resident A
                        pltpu.SemaphoreType.DMA((num_tiles,))],
        compiler_params=pltpu.CompilerParams(vmem_limit_bytes=vmem_limit),
    )(*ins)

    # Strip graph and channel padding (padded lanes are exactly zero).
    return out_pad[:num_graphs, :c_out]


# ----------------------------------- main -----------------------------------

if __name__ == "__main__":
    key = jax.random.PRNGKey(0)
    k_param, k_x, k_e = jax.random.split(key, 3)

    num_nodes = 16
    num_edges = 40
    in_channels = 4
    hidden_channels = 32
    out_channels = 3
    num_graphs = 2

    params = init_params(k_param, in_channels, hidden_channels, out_channels)

    x = jax.random.normal(k_x, (num_nodes, in_channels), jnp.float32)
    edge_index = jax.random.randint(k_e, (2, num_edges), 0, num_nodes, jnp.int32)
    batch = jnp.concatenate([
        jnp.zeros((num_nodes // 2,), jnp.int32),
        jnp.ones((num_nodes - num_nodes // 2,), jnp.int32),
    ])

    out = gcn_forward(params, x, edge_index, batch, num_graphs)
    out = jax.block_until_ready(out)
    assert out.shape == (num_graphs, out_channels)
    assert bool(jnp.all(jnp.isfinite(out)))
    print("KERNEL_OK")
</pallas_src>

<mosaic_0001>
module attributes {stable_mosaic.version = 11 : i64} {
  func.func @_gcn_fused_kernel(%arg0: memref<128x128xbf16, #tpu.memory_space<any>>, %arg1: memref<128x128xbf16, #tpu.memory_space<vmem>>, %arg2: memref<128x128xbf16, #tpu.memory_space<vmem>>, %arg3: memref<1x128xf32, #tpu.memory_space<vmem>>, %arg4: memref<128x128xbf16, #tpu.memory_space<vmem>>, %arg5: memref<1x128xf32, #tpu.memory_space<vmem>>, %arg6: memref<128x128xbf16, #tpu.memory_space<vmem>>, %arg7: memref<8x128xf32, #tpu.memory_space<vmem>>, %arg8: memref<8x128xf32, #tpu.memory_space<vmem>>, %arg9: memref<128x128xf32, #tpu.memory_space<vmem>>, %arg10: memref<1x128xf32, #tpu.memory_space<vmem>>, %arg11: memref<8x128xf32, #tpu.memory_space<vmem>>, %arg12: memref<128x128xbf16, #tpu.memory_space<vmem>>, %arg13: memref<1x!tpu.dma_semaphore, #tpu.memory_space<semaphore_mem>>) attributes {dimension_semantics = [], scalar_prefetch = 0 : i64, scratch_operands = 2 : i64, tpu.core_type = #tpu.core_type<tc>} {
    %c0_i32 = arith.constant 0 : i32
    %c0_i32_0 = arith.constant 0 : i32
    %c0_i32_1 = arith.constant 0 : i32
    %0 = tpu.memref_slice %arg0[%c0_i32_0, %c0_i32_1] : memref<128x128xbf16, #tpu.memory_space<any>> -> memref<128x128xbf16, #tpu.memory_space<any>>
    %c0_i32_2 = arith.constant 0 : i32
    %c0_i32_3 = arith.constant 0 : i32
    %1 = tpu.memref_slice %arg12[%c0_i32_2, %c0_i32_3] : memref<128x128xbf16, #tpu.memory_space<vmem>> -> memref<128x128xbf16, #tpu.memory_space<vmem>>
    %2 = tpu.memref_slice %arg13[%c0_i32] : memref<1x!tpu.dma_semaphore, #tpu.memory_space<semaphore_mem>> -> memref<1x!tpu.dma_semaphore, #tpu.memory_space<semaphore_mem>>
    %3 = tpu.memref_squeeze %2 : memref<1x!tpu.dma_semaphore, #tpu.memory_space<semaphore_mem>> -> memref<!tpu.dma_semaphore, #tpu.memory_space<semaphore_mem>>
    tpu.enqueue_dma source(%0 : memref<128x128xbf16, #tpu.memory_space<any>>) target(%1 : memref<128x128xbf16, #tpu.memory_space<vmem>>) target_semaphore(%3 : memref<!tpu.dma_semaphore, #tpu.memory_space<semaphore_mem>>)
    %c0 = arith.constant 0 : index
    %c0_4 = arith.constant 0 : index
    %4 = vector.load %arg1[%c0, %c0_4] : memref<128x128xbf16, #tpu.memory_space<vmem>>, vector<128x128xbf16>
    %c0_5 = arith.constant 0 : index
    %c0_6 = arith.constant 0 : index
    %5 = vector.load %arg2[%c0_5, %c0_6] : memref<128x128xbf16, #tpu.memory_space<vmem>>, vector<128x128xbf16>
    %cst = arith.constant dense<0.000000e+00> : vector<128x128xf32>
    %6 = tpu.matmul %4, %5, %cst {dimension_numbers = #tpu.dot_dimension_numbers<[1], [0], [0], [1], [0, 0, 1, 1], [], []>} : vector<128x128xbf16>, vector<128x128xbf16>, vector<128x128xf32> -> vector<128x128xf32>
    %7 = arith.truncf %6 : vector<128x128xf32> to vector<128x128xbf16>
    %c0_i32_7 = arith.constant 0 : i32
    %c0_i32_8 = arith.constant 0 : i32
    %c0_i32_9 = arith.constant 0 : i32
    %8 = tpu.memref_slice %arg0[%c0_i32_8, %c0_i32_9] : memref<128x128xbf16, #tpu.memory_space<any>> -> memref<128x128xbf16, #tpu.memory_space<any>>
    %c0_i32_10 = arith.constant 0 : i32
    %c0_i32_11 = arith.constant 0 : i32
    %9 = tpu.memref_slice %arg12[%c0_i32_10, %c0_i32_11] : memref<128x128xbf16, #tpu.memory_space<vmem>> -> memref<128x128xbf16, #tpu.memory_space<vmem>>
    %10 = tpu.memref_slice %arg13[%c0_i32_7] : memref<1x!tpu.dma_semaphore, #tpu.memory_space<semaphore_mem>> -> memref<1x!tpu.dma_semaphore, #tpu.memory_space<semaphore_mem>>
    %11 = tpu.memref_squeeze %10 : memref<1x!tpu.dma_semaphore, #tpu.memory_space<semaphore_mem>> -> memref<!tpu.dma_semaphore, #tpu.memory_space<semaphore_mem>>
    tpu.wait_dma2 semaphore(%11 : memref<!tpu.dma_semaphore, #tpu.memory_space<semaphore_mem>>) src(%8 : memref<128x128xbf16, #tpu.memory_space<any>>) dst(%9 : memref<128x128xbf16, #tpu.memory_space<vmem>>)
    %c0_12 = arith.constant 0 : index
    %c0_13 = arith.constant 0 : index
    %12 = vector.load %arg12[%c0_12, %c0_13] : memref<128x128xbf16, #tpu.memory_space<vmem>>, vector<128x128xbf16>
    %cst_14 = arith.constant dense<0.000000e+00> : vector<128x128xf32>
    %13 = tpu.matmul %12, %7, %cst_14 {dimension_numbers = #tpu.dot_dimension_numbers<[1], [0], [0], [1], [0, 0, 1, 1], [], []>} : vector<128x128xbf16>, vector<128x128xbf16>, vector<128x128xf32> -> vector<128x128xf32>
    %c0_15 = arith.constant 0 : index
    %c0_16 = arith.constant 0 : index
    %14 = vector.load %arg3[%c0_15, %c0_16] : memref<1x128xf32, #tpu.memory_space<vmem>>, vector<1x128xf32>
    %15 = vector.broadcast %14 : vector<1x128xf32> to vector<128x128xf32>
    %16 = arith.addf %13, %15 : vector<128x128xf32>
    %cst_17 = arith.constant 0.000000e+00 : f32
    %17 = vector.broadcast %cst_17 : f32 to vector<128x128xf32>
    %18 = arith.maximumf %16, %17 : vector<128x128xf32>
    %c0_18 = arith.constant 0 : index
    %c0_19 = arith.constant 0 : index
    %19 = vector.load %arg12[%c0_18, %c0_19] : memref<128x128xbf16, #tpu.memory_space<vmem>>, vector<128x128xbf16>
    %20 = arith.truncf %18 : vector<128x128xf32> to vector<128x128xbf16>
    %c0_20 = arith.constant 0 : index
    %c0_21 = arith.constant 0 : index
    %21 = vector.load %arg4[%c0_20, %c0_21] : memref<128x128xbf16, #tpu.memory_space<vmem>>, vector<128x128xbf16>
    %cst_22 = arith.constant dense<0.000000e+00> : vector<128x128xf32>
    %22 = tpu.matmul %20, %21, %cst_22 {dimension_numbers = #tpu.dot_dimension_numbers<[1], [0], [0], [1], [0, 0, 1, 1], [], []>} : vector<128x128xbf16>, vector<128x128xbf16>, vector<128x128xf32> -> vector<128x128xf32>
    %23 = arith.truncf %22 : vector<128x128xf32> to vector<128x128xbf16>
    %cst_23 = arith.constant dense<0.000000e+00> : vector<128x128xf32>
    %24 = tpu.matmul %19, %23, %cst_23 {dimension_numbers = #tpu.dot_dimension_numbers<[1], [0], [0], [1], [0, 0, 1, 1], [], []>} : vector<128x128xbf16>, vector<128x128xbf16>, vector<128x128xf32> -> vector<128x128xf32>
    %c0_24 = arith.constant 0 : index
    %c0_25 = arith.constant 0 : index
    %25 = vector.load %arg5[%c0_24, %c0_25] : memref<1x128xf32, #tpu.memory_space<vmem>>, vector<1x128xf32>
    %26 = vector.broadcast %25 : vector<1x128xf32> to vector<128x128xf32>
    %27 = arith.addf %24, %26 : vector<128x128xf32>
    %cst_26 = arith.constant 0.000000e+00 : f32
    %28 = vector.broadcast %cst_26 : f32 to vector<128x128xf32>
    %29 = arith.maximumf %27, %28 : vector<128x128xf32>
    %30 = arith.truncf %29 : vector<128x128xf32> to vector<128x128xbf16>
    %c0_27 = arith.constant 0 : index
    %c0_28 = arith.constant 0 : index
    %31 = vector.load %arg6[%c0_27, %c0_28] : memref<128x128xbf16, #tpu.memory_space<vmem>>, vector<128x128xbf16>
    %cst_29 = arith.constant dense<0.000000e+00> : vector<128x128xf32>
    %32 = tpu.matmul %30, %31, %cst_29 {dimension_numbers = #tpu.dot_dimension_numbers<[1], [0], [0], [1], [0, 0, 1, 1], [], []>} : vector<128x128xbf16>, vector<128x128xbf16>, vector<128x128xf32> -> vector<128x128xf32>
    %c0_30 = arith.constant 0 : index
    %c0_31 = arith.constant 0 : index
    %33 = vector.load %arg8[%c0_30, %c0_31] : memref<8x128xf32, #tpu.memory_space<vmem>>, vector<8x128xf32>
    %cst_32 = arith.constant dense<0.000000e+00> : vector<8x128xf32>
    %34 = tpu.matmul %33, %32, %cst_32 {dimension_numbers = #tpu.dot_dimension_numbers<[1], [0], [0], [1], [0, 0, 1, 1], [], []>} : vector<8x128xf32>, vector<128x128xf32>, vector<8x128xf32> -> vector<8x128xf32>
    %c0_33 = arith.constant 0 : index
    %c0_34 = arith.constant 0 : index
    %35 = vector.load %arg7[%c0_33, %c0_34] : memref<8x128xf32, #tpu.memory_space<vmem>>, vector<8x128xf32>
    %36 = arith.addf %34, %35 : vector<8x128xf32>
    %c0_35 = arith.constant 0 : index
    %c0_36 = arith.constant 0 : index
    %37 = vector.load %arg9[%c0_35, %c0_36] : memref<128x128xf32, #tpu.memory_space<vmem>>, vector<128x128xf32>
    %cst_37 = arith.constant dense<0.000000e+00> : vector<8x128xf32>
    %38 = tpu.matmul %36, %37, %cst_37 {dimension_numbers = #tpu.dot_dimension_numbers<[1], [0], [0], [1], [0, 0, 1, 1], [], []>} : vector<8x128xf32>, vector<128x128xf32>, vector<8x128xf32> -> vector<8x128xf32>
    %c0_38 = arith.constant 0 : index
    %c0_39 = arith.constant 0 : index
    %39 = vector.load %arg10[%c0_38, %c0_39] : memref<1x128xf32, #tpu.memory_space<vmem>>, vector<1x128xf32>
    %40 = vector.broadcast %39 : vector<1x128xf32> to vector<8x128xf32>
    %41 = arith.addf %38, %40 : vector<8x128xf32>
    %c0_40 = arith.constant 0 : index
    %c0_41 = arith.constant 0 : index
    %42 = vector.load %arg11[%c0_40, %c0_41] : memref<8x128xf32, #tpu.memory_space<vmem>>, vector<8x128xf32>
    tpu.vector_store %arg11[%c0_40, %c0_41], %41 {strides = array<i32>} : memref<8x128xf32, #tpu.memory_space<vmem>>, vector<8x128xf32>,
    return
  }
}

</mosaic_0001>

<llo_original>
// kernel: gcn_forward.1
$region0: #{gcn_forward.1}
  #allocation0 [shape = 'u32[]', space=smem, size = 0x4, offset = 0x4, fixed_abs, tag = 'smem constant byte address 0x4 - core index']
  #allocation1 [shape = 'u32[144,128]{1,0:T(1,128)}', space=vmem, size = 0x12000, scoped, tag = 'internal scratch']
  #allocation2 [shape = 'bf16[128,128]{1,0:T(16,128)(2,1)}', space=vmem, size = 0x8000, scoped, tag = 'scratch operand']
  #allocation3 [shape = 's32[1]{0}', space=sflag, size = 0x4, scoped, tag = 'scratch operand']
  #allocation4 [shape = 's32[]', space=sflag, size = 0x4, offset = 0, fixed_abs, tag = 'sflag constant byte address 0x0 - dummy sync flag']
  %s0 = inlined_call_operand.vmem [shape: bf16[128,128], index: 0, kind: input, shape index: {}]
  %s1 = inlined_call_operand.vmem [shape: bf16[128,128], index: 1, kind: input, shape index: {}]
  %s2 = inlined_call_operand.vmem [shape: bf16[128,128], index: 2, kind: input, shape index: {}]
  %s3 = inlined_call_operand.vmem [shape: f32[1,128], index: 3, kind: input, shape index: {}]
  %s4 = inlined_call_operand.vmem [shape: bf16[128,128], index: 4, kind: input, shape index: {}]
  %s5 = inlined_call_operand.vmem [shape: f32[1,128], index: 5, kind: input, shape index: {}]
  %s6 = inlined_call_operand.vmem [shape: bf16[128,128], index: 6, kind: input, shape index: {}]
  %s7 = inlined_call_operand.vmem [shape: f32[8,128], index: 7, kind: input, shape index: {}]
  %s8 = inlined_call_operand.vmem [shape: f32[8,128], index: 8, kind: input, shape index: {}]
  %s9 = inlined_call_operand.vmem [shape: f32[128,128], index: 9, kind: input, shape index: {}]
  %s10 = inlined_call_operand.vmem [shape: f32[1,128], index: 10, kind: input, shape index: {}]
  %s11 = inlined_call_operand.vmem [shape: f32[8,128], index: 11, kind: output, shape index: {}]
  %s12 = sld [smem:[#allocation0]]
  $region84: #{gcn_forward.1} parent=0
    _
  %s14 = ssub.s32 1, %s12
  %s15 = scalar_select 0, %s14, %s12
  // Predicated region
  $region2: #{gcn_forward.1} parent=0 // pred_check
    _
  $region3: #{gcn_forward.1} parent=0 // pred_check_branch
    %17 = sbr.rel (0) target = $region5
  $region4: #{gcn_forward.1} parent=0 // pred_region
    _
  $region5: #{gcn_forward.1} parent=0 // pred_fallthru
    _
  // Predicated region
  $region6: #{gcn_forward.1} parent=0 // pred_check
    _
  $region7: #{gcn_forward.1} parent=0 // pred_check_branch
    %19 = sbr.rel (0) target = $region9
  $region8: #{gcn_forward.1} parent=0 // pred_region
    _
  $region9: #{gcn_forward.1} parent=0 // pred_fallthru
    _
  // Predicated region
  $region10: #{gcn_forward.1} parent=0 // pred_check
    _
  $region11: #{gcn_forward.1} parent=0 // pred_check_branch
    %21 = sbr.rel (0) target = $region13
  $region12: #{gcn_forward.1} parent=0 // pred_region
    _
  $region13: #{gcn_forward.1} parent=0 // pred_fallthru
    _
  // Predicated region
  $region14: #{gcn_forward.1} parent=0 // pred_check
    _
  $region15: #{gcn_forward.1} parent=0 // pred_check_branch
    %23 = sbr.rel (0) target = $region17
  $region16: #{gcn_forward.1} parent=0 // pred_region
    _
  $region17: #{gcn_forward.1} parent=0 // pred_fallthru
    _
  // Predicated region
  $region18: #{gcn_forward.1} parent=0 // pred_check
    _
  $region19: #{gcn_forward.1} parent=0 // pred_check_branch
    %25 = sbr.rel (0) target = $region21
  $region20: #{gcn_forward.1} parent=0 // pred_region
    _
  $region21: #{gcn_forward.1} parent=0 // pred_fallthru
    _
  // Predicated region
  $region22: #{gcn_forward.1} parent=0 // pred_check
    _
  $region23: #{gcn_forward.1} parent=0 // pred_check_branch
    %27 = sbr.rel (0) target = $region25
  $region24: #{gcn_forward.1} parent=0 // pred_region
    _
  $region25: #{gcn_forward.1} parent=0 // pred_fallthru
    _
  // Predicated region
  $region26: #{gcn_forward.1} parent=0 // pred_check
    _
  $region27: #{gcn_forward.1} parent=0 // pred_check_branch
    %29 = sbr.rel (0) target = $region29
  $region28: #{gcn_forward.1} parent=0 // pred_region
    _
  $region29: #{gcn_forward.1} parent=0 // pred_fallthru
    _
  // Predicated region
  $region30: #{gcn_forward.1} parent=0 // pred_check
    _
  $region31: #{gcn_forward.1} parent=0 // pred_check_branch
    %31 = sbr.rel (0) target = $region33
  $region32: #{gcn_forward.1} parent=0 // pred_region
    _
  $region33: #{gcn_forward.1} parent=0 // pred_fallthru
    _
  // Predicated region
  $region34: #{gcn_forward.1} parent=0 // pred_check
    _
  $region35: #{gcn_forward.1} parent=0 // pred_check_branch
    %33 = sbr.rel (0) target = $region37
  $region36: #{gcn_forward.1} parent=0 // pred_region
    _
  $region37: #{gcn_forward.1} parent=0 // pred_fallthru
    _
  // Predicated region
  $region38: #{gcn_forward.1} parent=0 // pred_check
    _
  $region39: #{gcn_forward.1} parent=0 // pred_check_branch
    %35 = sbr.rel (0) target = $region41
  $region40: #{gcn_forward.1} parent=0 // pred_region
    _
  $region41: #{gcn_forward.1} parent=0 // pred_fallthru
    _
  %p38 = scmp.lt.u32.totalorder 64, 8
  %p39 = pneg %p38
  // Predicated region
  $region42: #{gcn_forward.1} parent=0 // pred_check
    _
  $region43: #{gcn_forward.1} parent=0 // pred_check_branch
    %41 = sbr.rel (%p38) target = $region45
  $region44: #{gcn_forward.1} parent=0 // pred_region
    %s56 = sand.u32 64, 7
    %p57 = scmp.eq.s32.totalorder %s56, 0
    // Predicated region
    $region57: #{gcn_forward.1} parent=44 // pred_check
      %p58 = pneg %p57
    $region58: #{gcn_forward.1} parent=44 // pred_check_branch
      %60 = sbr.rel (%p58) target = $region60
    $region59: #{gcn_forward.1} parent=44 // pred_region
      loop: start=0, step=1, limit=1
      $region61: #{gcn_forward.1} parent=59 // loop_pre_header
        _
      $region62: #{gcn_forward.1} parent=59 // loop_header
        %s62 = sphi 0, %s66
        %p63 = scmp.ge.s32.totalorder %s62, 1
        %s67 = sphi %s0, %s0
        %s68 = sphi [#allocation2], [#allocation2]
      $region63: #{gcn_forward.1} parent=59 // loop_header_branch
        %65 = sbr.rel (%p63) target = $region67
      $region64: #{gcn_forward.1} parent=59 // loop_body
        %v69 = vld [vmem:[%s67] sm:$0xff]
        %70 = vst [vmem:[%s68] sm:$0xff] %v69
        %v71 = vld [vmem:[%s67 + $0x8] sm:$0xff]
        %72 = vst [vmem:[%s68 + $0x8] sm:$0xff] %v71
        %v73 = vld [vmem:[%s67 + $0x10] sm:$0xff]
        %74 = vst [vmem:[%s68 + $0x10] sm:$0xff] %v73
        %v75 = vld [vmem:[%s67 + $0x18] sm:$0xff]
        %76 = vst [vmem:[%s68 + $0x18] sm:$0xff] %v75
        %v77 = vld [vmem:[%s67 + $0x20] sm:$0xff]
        %78 = vst [vmem:[%s68 + $0x20] sm:$0xff] %v77
        %v79 = vld [vmem:[%s67 + $0x28] sm:$0xff]
        %80 = vst [vmem:[%s68 + $0x28] sm:$0xff] %v79
        %v81 = vld [vmem:[%s67 + $0x30] sm:$0xff]
        %82 = vst [vmem:[%s68 + $0x30] sm:$0xff] %v81
        %v83 = vld [vmem:[%s67 + $0x38] sm:$0xff]
        %84 = vst [vmem:[%s68 + $0x38] sm:$0xff] %v83
      $region65: #{gcn_forward.1} parent=59 // loop_footer
        %s66 = sadd.s32 1, %s62
      $region66: #{gcn_forward.1} parent=59 // loop_footer_branch
        %61 = sbr.rel target = $region62
      $region67: #{gcn_forward.1} parent=59 // loop_exit
        _
    $region60: #{gcn_forward.1} parent=44 // pred_fallthru
      _
    %p85 = pneg %p57
    // Predicated region
    $region68: #{gcn_forward.1} parent=44 // pred_check
      _
    $region69: #{gcn_forward.1} parent=44 // pred_check_branch
      %87 = sbr.rel (%p57) target = $region71
    $region70: #{gcn_forward.1} parent=44 // pred_region
      %s88 = sand.u32 64, 7
    $region71: #{gcn_forward.1} parent=44 // pred_fallthru
      _
  $region45: #{gcn_forward.1} parent=0 // pred_fallthru
    _
  // Predicated region
  $region46: #{gcn_forward.1} parent=0 // pred_check
    %p42 = pneg %p38
  $region47: #{gcn_forward.1} parent=0 // pred_check_branch
    %44 = sbr.rel (%p42) target = $region49
  $region48: #{gcn_forward.1} parent=0 // pred_region
    %s45 = sshllo.u32 0, 64
    loop: start=0, step=1, limit=1
    $region50: #{gcn_forward.1} parent=48 // loop_pre_header
      _
    $region51: #{gcn_forward.1} parent=48 // loop_header
      %s47 = sphi 0, %s51
      %p48 = scmp.ge.s32.totalorder %s47, 1
      %s52 = sphi %s0, %s0
      %s53 = sphi [#allocation2], [#allocation2]
    $region52: #{gcn_forward.1} parent=48 // loop_header_branch
      %50 = sbr.rel (%p48) target = $region56
    $region53: #{gcn_forward.1} parent=48 // loop_body
      %v54 = vld [vmem:[%s52] sm:%s45]
      %55 = vst [vmem:[%s53] sm:%s45] %v54
    $region54: #{gcn_forward.1} parent=48 // loop_footer
      %s51 = sadd.s32 1, %s47
    $region55: #{gcn_forward.1} parent=48 // loop_footer_branch
      %46 = sbr.rel target = $region51
    $region56: #{gcn_forward.1} parent=48 // loop_exit
      _
  $region49: #{gcn_forward.1} parent=0 // pred_fallthru
    _
  // Predicated region
  $region72: #{gcn_forward.1} parent=0 // pred_check
    _
  $region73: #{gcn_forward.1} parent=0 // pred_check_branch
    %91 = sbr.rel (0) target = $region75
  $region74: #{gcn_forward.1} parent=0 // pred_region
    %92 = vsyncadd [#allocation3], 1024
  $region75: #{gcn_forward.1} parent=0 // pred_fallthru
    _
  %v93 = vld [vmem:[%s1] sm:$0xf]
  %v94 = vld [vmem:[%s1 + $0x4] sm:$0xf]
  %v95 = vld [vmem:[%s1 + $0x8] sm:$0xf]
  %v96 = vld [vmem:[%s1 + $0xc] sm:$0xf]
  %v97 = vld [vmem:[%s1 + $0x10] sm:$0xf]
  %v98 = vld [vmem:[%s1 + $0x14] sm:$0xf]
  %v99 = vld [vmem:[%s1 + $0x18] sm:$0xf]
  %v100 = vld [vmem:[%s1 + $0x1c] sm:$0xf]
  %v101 = vld [vmem:[%s1 + $0x20] sm:$0xf]
  %v102 = vld [vmem:[%s1 + $0x24] sm:$0xf]
  %v103 = vld [vmem:[%s1 + $0x28] sm:$0xf]
  %v104 = vld [vmem:[%s1 + $0x2c] sm:$0xf]
  %v105 = vld [vmem:[%s1 + $0x30] sm:$0xf]
  %v106 = vld [vmem:[%s1 + $0x34] sm:$0xf]
  %v107 = vld [vmem:[%s1 + $0x38] sm:$0xf]
  %v108 = vld [vmem:[%s1 + $0x3c] sm:$0xf]
  %v109 = vld [vmem:[%s2] sm:$0xf]
  %v110 = vld [vmem:[%s2 + $0x4] sm:$0xf]
  %v111 = vld [vmem:[%s2 + $0x8] sm:$0xf]
  %v112 = vld [vmem:[%s2 + $0xc] sm:$0xf]
  %v113 = vld [vmem:[%s2 + $0x10] sm:$0xf]
  %v114 = vld [vmem:[%s2 + $0x14] sm:$0xf]
  %v115 = vld [vmem:[%s2 + $0x18] sm:$0xf]
  %v116 = vld [vmem:[%s2 + $0x1c] sm:$0xf]
  %v117 = vld [vmem:[%s2 + $0x20] sm:$0xf]
  %v118 = vld [vmem:[%s2 + $0x24] sm:$0xf]
  %v119 = vld [vmem:[%s2 + $0x28] sm:$0xf]
  %v120 = vld [vmem:[%s2 + $0x2c] sm:$0xf]
  %v121 = vld [vmem:[%s2 + $0x30] sm:$0xf]
  %v122 = vld [vmem:[%s2 + $0x34] sm:$0xf]
  %v123 = vld [vmem:[%s2 + $0x38] sm:$0xf]
  %v124 = vld [vmem:[%s2 + $0x3c] sm:$0xf]
  %v141 = vunpack.c.l.b16 %v93
  %v142 = vunpack.c.l.b16 %v94
  %v143 = vunpack.c.l.b16 %v95
  %v144 = vunpack.c.l.b16 %v96
  %v145 = vunpack.c.l.b16 %v97
  %v146 = vunpack.c.l.b16 %v98
  %v147 = vunpack.c.l.b16 %v99
  %v148 = vunpack.c.l.b16 %v100
  %v149 = vunpack.c.l.b16 %v101
  %v150 = vunpack.c.l.b16 %v102
  %v151 = vunpack.c.l.b16 %v103
  %v152 = vunpack.c.l.b16 %v104
  %v153 = vunpack.c.l.b16 %v105
  %v154 = vunpack.c.l.b16 %v106
  %v155 = vunpack.c.l.b16 %v107
  %v156 = vunpack.c.l.b16 %v108
  %v157 = vpack.c.b16 %v142, %v141
  %v158 = vpack.c.b16 %v144, %v143
  %v159 = vpack.c.b16 %v146, %v145
  %v160 = vpack.c.b16 %v148, %v147
  %v161 = vpack.c.b16 %v150, %v149
  %v162 = vpack.c.b16 %v152, %v151
  %v163 = vpack.c.b16 %v154, %v153
  %v164 = vpack.c.b16 %v156, %v155
  %v189 = vunpack.c.l.b16 %v109
  %v190 = vunpack.c.l.b16 %v110
  %v191 = vunpack.c.l.b16 %v111
  %v192 = vunpack.c.l.b16 %v112
  %v193 = vunpack.c.l.b16 %v113
  %v194 = vunpack.c.l.b16 %v114
  %v195 = vunpack.c.l.b16 %v115
  %v196 = vunpack.c.l.b16 %v116
  %v197 = vunpack.c.l.b16 %v117
  %v198 = vunpack.c.l.b16 %v118
  %v199 = vunpack.c.l.b16 %v119
  %v200 = vunpack.c.l.b16 %v120
  %v201 = vunpack.c.l.b16 %v121
  %v202 = vunpack.c.l.b16 %v122
  %v203 = vunpack.c.l.b16 %v123
  %v204 = vunpack.c.l.b16 %v124
  %v205 = vpack.c.b16 %v190, %v189
  %v206 = vpack.c.b16 %v192, %v191
  %v207 = vpack.c.b16 %v194, %v193
  %v208 = vpack.c.b16 %v196, %v195
  %v209 = vpack.c.b16 %v198, %v197
  %v210 = vpack.c.b16 %v200, %v199
  %v211 = vpack.c.b16 %v202, %v201
  %v212 = vpack.c.b16 %v204, %v203
  %221 = vmatprep.subr.bf16.mxu0 0
  %222 = vmatpush1.bf16.msra.mxu0 %v205
  %223 = vmatprep.subr.bf16.mxu0 0
  %224 = vmatpush1.bf16.msra.mxu0 %v206
  %225 = vmatprep.subr.bf16.mxu0 0
  %226 = vmatpush1.bf16.msra.mxu0 %v207
  %227 = vmatprep.subr.bf16.mxu0 0
  %228 = vmatpush1.bf16.msra.mxu0 %v208
  %229 = vmatprep.subr.bf16.mxu0 0
  %230 = vmatpush1.bf16.msra.mxu0 %v209
  %231 = vmatprep.subr.bf16.mxu0 0
  %232 = vmatpush1.bf16.msra.mxu0 %v210
  %233 = vmatprep.subr.bf16.mxu0 0
  %234 = vmatpush1.bf16.msra.mxu0 %v211
  %235 = vmatprep.subr.bf16.mxu0 0
  %236 = vmatpush1.bf16.msra.mxu0 %v212
  %237 = vmatprep.subr.bf16.mxu0 0
  %238 = vmatpush1.bf16.msra.mxu0 0
  %239 = vmatprep.subr.bf16.mxu0 0
  %240 = vmatpush1.bf16.msra.mxu0 0
  %241 = vmatprep.subr.bf16.mxu0 0
  %242 = vmatpush1.bf16.msra.mxu0 0
  %243 = vmatprep.subr.bf16.mxu0 0
  %244 = vmatpush1.bf16.msra.mxu0 0
  %245 = vmatprep.subr.bf16.mxu0 0
  %246 = vmatpush1.bf16.msra.mxu0 0
  %247 = vmatprep.subr.bf16.mxu0 0
  %248 = vmatpush1.bf16.msra.mxu0 0
  %249 = vmatprep.subr.bf16.mxu0 0
  %250 = vmatpush1.bf16.msra.mxu0 0
  %251 = vmatprep.subr.bf16.mxu0 0
  %252 = vmatpush1.bf16.msra.mxu0 0
  %253 = vmatprep.mubr.bf16.mxu0 0
  %254 = vmatmul.mubr.bf16.gmra.mrb[0].mxu0 %v157
  %v255 = vpop.f32.mrb[0].mxu0
  %v256 = vadd.f32 0.0, %v255
  %v257 = vpop.f32.mrb[0].mxu0
  %v258 = vpop.f32.mrb[0].mxu0
  %v259 = vadd.f32 0.0, %v258
  %v260 = vpop.f32.mrb[0].mxu0
  %261 = vmatprep.mubr.bf16.mxu0 0
  %262 = vmatmul.mubr.bf16.gmra.mrb[0].mxu0 %v158
  %v263 = vpop.f32.mrb[0].mxu0
  %v264 = vadd.f32 0.0, %v263
  %v265 = vpop.f32.mrb[0].mxu0
  %v266 = vpop.f32.mrb[0].mxu0
  %v267 = vadd.f32 0.0, %v266
  %v268 = vpop.f32.mrb[0].mxu0
  %269 = vmatprep.mubr.bf16.mxu0 0
  %270 = vmatmul.mubr.bf16.gmra.mrb[0].mxu0 %v159
  %v271 = vpop.f32.mrb[0].mxu0
  %v272 = vadd.f32 0.0, %v271
  %v273 = vpop.f32.mrb[0].mxu0
  %v274 = vpop.f32.mrb[0].mxu0
  %v275 = vadd.f32 0.0, %v274
  %v276 = vpop.f32.mrb[0].mxu0
  %277 = vmatprep.mubr.bf16.mxu0 0
  %278 = vmatmul.mubr.bf16.gmra.mrb[0].mxu0 %v160
  %v279 = vpop.f32.mrb[0].mxu0
  %v280 = vadd.f32 0.0, %v279
  %v281 = vpop.f32.mrb[0].mxu0
  %v282 = vpop.f32.mrb[0].mxu0
  %v283 = vadd.f32 0.0, %v282
  %v284 = vpop.f32.mrb[0].mxu0
  %285 = vmatprep.mubr.bf16.mxu0 0
  %286 = vmatmul.mubr.bf16.gmra.mrb[0].mxu0 %v161
  %v287 = vpop.f32.mrb[0].mxu0
  %v288 = vadd.f32 0.0, %v287
  %v289 = vpop.f32.mrb[0].mxu0
  %v290 = vpop.f32.mrb[0].mxu0
  %v291 = vadd.f32 0.0, %v290
  %v292 = vpop.f32.mrb[0].mxu0
  %293 = vmatprep.mubr.bf16.mxu0 0
  %294 = vmatmul.mubr.bf16.gmra.mrb[0].mxu0 %v162
  %v295 = vpop.f32.mrb[0].mxu0
  %v296 = vadd.f32 0.0, %v295
  %v297 = vpop.f32.mrb[0].mxu0
  %v298 = vpop.f32.mrb[0].mxu0
  %v299 = vadd.f32 0.0, %v298
  %v300 = vpop.f32.mrb[0].mxu0
  %301 = vmatprep.mubr.bf16.mxu0 0
  %302 = vmatmul.mubr.bf16.gmra.mrb[0].mxu0 %v163
  %v303 = vpop.f32.mrb[0].mxu0
  %v304 = vadd.f32 0.0, %v303
  %v305 = vpop.f32.mrb[0].mxu0
  %v306 = vpop.f32.mrb[0].mxu0
  %v307 = vadd.f32 0.0, %v306
  %v308 = vpop.f32.mrb[0].mxu0
  %309 = vmatprep.mubr.bf16.mxu0 0
  %310 = vmatmul.mubr.bf16.gmra.mrb[0].mxu0 %v164
  %v311 = vpop.f32.mrb[0].mxu0
  %v312 = vadd.f32 0.0, %v311
  %v313 = vpop.f32.mrb[0].mxu0
  %v314 = vpop.f32.mrb[0].mxu0
  %v315 = vadd.f32 0.0, %v314
  %v316 = vpop.f32.mrb[0].mxu0
  %317 = vdwg.mxu0
  %v318 = vpack.c.bf16 %v259, %v256
  %v319 = vpack.c.bf16 %v267, %v264
  %v320 = vpack.c.bf16 %v275, %v272
  %v321 = vpack.c.bf16 %v283, %v280
  %v322 = vpack.c.bf16 %v291, %v288
  %v323 = vpack.c.bf16 %v299, %v296
  %v324 = vpack.c.bf16 %v307, %v304
  %v325 = vpack.c.bf16 %v315, %v312
  %s326 = smul.u32 4, 16
  %s327 = smul.u32 %s326, 1
  %s328 = sshll.u32 %s327, 4
  %329 = dma.done [#allocation3], %s328
  %v330 = vld [vmem:[#allocation2] sm:$0xff]
  %v331 = vld [vmem:[#allocation2 + $0x8] sm:$0xff]
  %v332 = vld [vmem:[#allocation2 + $0x10] sm:$0xff]
  %v333 = vld [vmem:[#allocation2 + $0x18] sm:$0xff]
  %v334 = vld [vmem:[#allocation2 + $0x20] sm:$0xff]
  %v335 = vld [vmem:[#allocation2 + $0x28] sm:$0xff]
  %v336 = vld [vmem:[#allocation2 + $0x30] sm:$0xff]
  %v337 = vld [vmem:[#allocation2 + $0x38] sm:$0xff]
  %v338 = vld [vmem:[%s3] sm:$0x1]
  %v340 = vlaneseq
  %v341 = vshrl.u32 %v340, 7
  %v342 = vsub.s32 0, %v341
  %v343 = vrot.slane %v338, %v342
  %345 = vmatprep.subr.bf16.mxu0 0
  %346 = vmatpush1.bf16.msra.mxu0 %v318
  %347 = vmatprep.subr.bf16.mxu0 0
  %348 = vmatpush1.bf16.msra.mxu0 %v319
  %349 = vmatprep.subr.bf16.mxu0 0
  %350 = vmatpush1.bf16.msra.mxu0 %v320
  %351 = vmatprep.subr.bf16.mxu0 0
  %352 = vmatpush1.bf16.msra.mxu0 %v321
  %353 = vmatprep.subr.bf16.mxu0 0
  %354 = vmatpush1.bf16.msra.mxu0 %v322
  %355 = vmatprep.subr.bf16.mxu0 0
  %356 = vmatpush1.bf16.msra.mxu0 %v323
  %357 = vmatprep.subr.bf16.mxu0 0
  %358 = vmatpush1.bf16.msra.mxu0 %v324
  %359 = vmatprep.subr.bf16.mxu0 0
  %360 = vmatpush1.bf16.msra.mxu0 %v325
  %361 = vmatprep.subr.bf16.mxu0 0
  %362 = vmatpush1.bf16.msra.mxu0 0
  %363 = vmatprep.subr.bf16.mxu0 0
  %364 = vmatpush1.bf16.msra.mxu0 0
  %365 = vmatprep.subr.bf16.mxu0 0
  %366 = vmatpush1.bf16.msra.mxu0 0
  %367 = vmatprep.subr.bf16.mxu0 0
  %368 = vmatpush1.bf16.msra.mxu0 0
  %369 = vmatprep.subr.bf16.mxu0 0
  %370 = vmatpush1.bf16.msra.mxu0 0
  %371 = vmatprep.subr.bf16.mxu0 0
  %372 = vmatpush1.bf16.msra.mxu0 0
  %373 = vmatprep.subr.bf16.mxu0 0
  %374 = vmatpush1.bf16.msra.mxu0 0
  %375 = vmatprep.subr.bf16.mxu0 0
  %376 = vmatpush1.bf16.msra.mxu0 0
  %377 = vmatprep.mubr.bf16.mxu0 0
  %378 = vmatmul.mubr.bf16.gmra.mrb[0].mxu0 %v330
  %v379 = vpop.f32.mrb[0].mxu0
  %v380 = vadd.f32 %v343, %v379
  %v381 = vpop.f32.mrb[0].mxu0
  %v382 = vpop.f32.mrb[0].mxu0
  %v383 = vadd.f32 %v343, %v382
  %v384 = vpop.f32.mrb[0].mxu0
  %385 = vmatprep.mubr.bf16.mxu0 0
  %386 = vmatmul.mubr.bf16.gmra.mrb[0].mxu0 %v331
  %v387 = vpop.f32.mrb[0].mxu0
  %v388 = vadd.f32 %v343, %v387
  %v389 = vpop.f32.mrb[0].mxu0
  %v390 = vpop.f32.mrb[0].mxu0
  %v391 = vadd.f32 %v343, %v390
  %v392 = vpop.f32.mrb[0].mxu0
  %393 = vmatprep.mubr.bf16.mxu0 0
  %394 = vmatmul.mubr.bf16.gmra.mrb[0].mxu0 %v332
  %v395 = vpop.f32.mrb[0].mxu0
  %v396 = vadd.f32 %v343, %v395
  %v397 = vpop.f32.mrb[0].mxu0
  %v398 = vpop.f32.mrb[0].mxu0
  %v399 = vadd.f32 %v343, %v398
  %v400 = vpop.f32.mrb[0].mxu0
  %401 = vmatprep.mubr.bf16.mxu0 0
  %402 = vmatmul.mubr.bf16.gmra.mrb[0].mxu0 %v333
  %v403 = vpop.f32.mrb[0].mxu0
  %v404 = vadd.f32 %v343, %v403
  %v405 = vpop.f32.mrb[0].mxu0
  %v406 = vpop.f32.mrb[0].mxu0
  %v407 = vadd.f32 %v343, %v406
  %v408 = vpop.f32.mrb[0].mxu0
  %409 = vmatprep.mubr.bf16.mxu0 0
  %410 = vmatmul.mubr.bf16.gmra.mrb[0].mxu0 %v334
  %v411 = vpop.f32.mrb[0].mxu0
  %v412 = vadd.f32 %v343, %v411
  %v413 = vpop.f32.mrb[0].mxu0
  %v414 = vpop.f32.mrb[0].mxu0
  %v415 = vadd.f32 %v343, %v414
  %v416 = vpop.f32.mrb[0].mxu0
  %417 = vmatprep.mubr.bf16.mxu0 0
  %418 = vmatmul.mubr.bf16.gmra.mrb[0].mxu0 %v335
  %v419 = vpop.f32.mrb[0].mxu0
  %v420 = vadd.f32 %v343, %v419
  %v421 = vpop.f32.mrb[0].mxu0
  %v422 = vpop.f32.mrb[0].mxu0
  %v423 = vadd.f32 %v343, %v422
  %v424 = vpop.f32.mrb[0].mxu0
  %425 = vmatprep.mubr.bf16.mxu0 0
  %426 = vmatmul.mubr.bf16.gmra.mrb[0].mxu0 %v336
  %v427 = vpop.f32.mrb[0].mxu0
  %v428 = vadd.f32 %v343, %v427
  %v429 = vpop.f32.mrb[0].mxu0
  %v430 = vpop.f32.mrb[0].mxu0
  %v431 = vadd.f32 %v343, %v430
  %v432 = vpop.f32.mrb[0].mxu0
  %433 = vmatprep.mubr.bf16.mxu0 0
  %434 = vmatmul.mubr.bf16.gmra.mrb[0].mxu0 %v337
  %v435 = vpop.f32.mrb[0].mxu0
  %v436 = vadd.f32 %v343, %v435
  %v437 = vpop.f32.mrb[0].mxu0
  %v438 = vpop.f32.mrb[0].mxu0
  %v439 = vadd.f32 %v343, %v438
  %v440 = vpop.f32.mrb[0].mxu0
  %441 = vdwg.mxu0
  %v442 = vmax.f32 %v380, 0.0
  %v443 = vmax.f32 %v383, 0.0
  %v444 = vmax.f32 %v388, 0.0
  %v445 = vmax.f32 %v391, 0.0
  %v446 = vmax.f32 %v396, 0.0
  %v447 = vmax.f32 %v399, 0.0
  %v448 = vmax.f32 %v404, 0.0
  %v449 = vmax.f32 %v407, 0.0
  %v450 = vmax.f32 %v412, 0.0
  %v451 = vmax.f32 %v415, 0.0
  %v452 = vmax.f32 %v420, 0.0
  %v453 = vmax.f32 %v423, 0.0
  %v454 = vmax.f32 %v428, 0.0
  %v455 = vmax.f32 %v431, 0.0
  %v456 = vmax.f32 %v436, 0.0
  %v457 = vmax.f32 %v439, 0.0
  %v458 = vpack.c.bf16 %v443, %v442
  %v459 = vpack.c.bf16 %v445, %v444
  %v460 = vpack.c.bf16 %v447, %v446
  %v461 = vpack.c.bf16 %v449, %v448
  %v462 = vpack.c.bf16 %v451, %v450
  %v463 = vpack.c.bf16 %v453, %v452
  %v464 = vpack.c.bf16 %v455, %v454
  %v465 = vpack.c.bf16 %v457, %v456
  %v466 = vld [vmem:[%s4] sm:$0xf]
  %v467 = vld [vmem:[%s4 + $0x4] sm:$0xf]
  %v468 = vld [vmem:[%s4 + $0x8] sm:$0xf]
  %v469 = vld [vmem:[%s4 + $0xc] sm:$0xf]
  %v470 = vld [vmem:[%s4 + $0x10] sm:$0xf]
  %v471 = vld [vmem:[%s4 + $0x14] sm:$0xf]
  %v472 = vld [vmem:[%s4 + $0x18] sm:$0xf]
  %v473 = vld [vmem:[%s4 + $0x1c] sm:$0xf]
  %v474 = vld [vmem:[%s4 + $0x20] sm:$0xf]
  %v475 = vld [vmem:[%s4 + $0x24] sm:$0xf]
  %v476 = vld [vmem:[%s4 + $0x28] sm:$0xf]
  %v477 = vld [vmem:[%s4 + $0x2c] sm:$0xf]
  %v478 = vld [vmem:[%s4 + $0x30] sm:$0xf]
  %v479 = vld [vmem:[%s4 + $0x34] sm:$0xf]
  %v480 = vld [vmem:[%s4 + $0x38] sm:$0xf]
  %v481 = vld [vmem:[%s4 + $0x3c] sm:$0xf]
  %v498 = vunpack.c.l.b16 %v466
  %v499 = vunpack.c.l.b16 %v467
  %v500 = vunpack.c.l.b16 %v468
  %v501 = vunpack.c.l.b16 %v469
  %v502 = vunpack.c.l.b16 %v470
  %v503 = vunpack.c.l.b16 %v471
  %v504 = vunpack.c.l.b16 %v472
  %v505 = vunpack.c.l.b16 %v473
  %v506 = vunpack.c.l.b16 %v474
  %v507 = vunpack.c.l.b16 %v475
  %v508 = vunpack.c.l.b16 %v476
  %v509 = vunpack.c.l.b16 %v477
  %v510 = vunpack.c.l.b16 %v478
  %v511 = vunpack.c.l.b16 %v479
  %v512 = vunpack.c.l.b16 %v480
  %v513 = vunpack.c.l.b16 %v481
  %v514 = vpack.c.b16 %v499, %v498
  %v515 = vpack.c.b16 %v501, %v500
  %v516 = vpack.c.b16 %v503, %v502
  %v517 = vpack.c.b16 %v505, %v504
  %v518 = vpack.c.b16 %v507, %v506
  %v519 = vpack.c.b16 %v509, %v508
  %v520 = vpack.c.b16 %v511, %v510
  %v521 = vpack.c.b16 %v513, %v512
  %530 = vmatprep.subr.bf16.mxu0 0
  %531 = vmatpush1.bf16.msra.mxu0 %v514
  %532 = vmatprep.subr.bf16.mxu0 0
  %533 = vmatpush1.bf16.msra.mxu0 %v515
  %534 = vmatprep.subr.bf16.mxu0 0
  %535 = vmatpush1.bf16.msra.mxu0 %v516
  %536 = vmatprep.subr.bf16.mxu0 0
  %537 = vmatpush1.bf16.msra.mxu0 %v517
  %538 = vmatprep.subr.bf16.mxu0 0
  %539 = vmatpush1.bf16.msra.mxu0 %v518
  %540 = vmatprep.subr.bf16.mxu0 0
  %541 = vmatpush1.bf16.msra.mxu0 %v519
  %542 = vmatprep.subr.bf16.mxu0 0
  %543 = vmatpush1.bf16.msra.mxu0 %v520
  %544 = vmatprep.subr.bf16.mxu0 0
  %545 = vmatpush1.bf16.msra.mxu0 %v521
  %546 = vmatprep.subr.bf16.mxu0 0
  %547 = vmatpush1.bf16.msra.mxu0 0
  %548 = vmatprep.subr.bf16.mxu0 0
  %549 = vmatpush1.bf16.msra.mxu0 0
  %550 = vmatprep.subr.bf16.mxu0 0
  %551 = vmatpush1.bf16.msra.mxu0 0
  %552 = vmatprep.subr.bf16.mxu0 0
  %553 = vmatpush1.bf16.msra.mxu0 0
  %554 = vmatprep.subr.bf16.mxu0 0
  %555 = vmatpush1.bf16.msra.mxu0 0
  %556 = vmatprep.subr.bf16.mxu0 0
  %557 = vmatpush1.bf16.msra.mxu0 0
  %558 = vmatprep.subr.bf16.mxu0 0
  %559 = vmatpush1.bf16.msra.mxu0 0
  %560 = vmatprep.subr.bf16.mxu0 0
  %561 = vmatpush1.bf16.msra.mxu0 0
  %562 = vmatprep.mubr.bf16.mxu0 0
  %563 = vmatmul.mubr.bf16.gmra.mrb[0].mxu0 %v458
  %v564 = vpop.f32.mrb[0].mxu0
  %v565 = vadd.f32 0.0, %v564
  %v566 = vpop.f32.mrb[0].mxu0
  %v567 = vpop.f32.mrb[0].mxu0
  %v568 = vadd.f32 0.0, %v567
  %v569 = vpop.f32.mrb[0].mxu0
  %570 = vmatprep.mubr.bf16.mxu0 0
  %571 = vmatmul.mubr.bf16.gmra.mrb[0].mxu0 %v459
  %v572 = vpop.f32.mrb[0].mxu0
  %v573 = vadd.f32 0.0, %v572
  %v574 = vpop.f32.mrb[0].mxu0
  %v575 = vpop.f32.mrb[0].mxu0
  %v576 = vadd.f32 0.0, %v575
  %v577 = vpop.f32.mrb[0].mxu0
  %578 = vmatprep.mubr.bf16.mxu0 0
  %579 = vmatmul.mubr.bf16.gmra.mrb[0].mxu0 %v460
  %v580 = vpop.f32.mrb[0].mxu0
  %v581 = vadd.f32 0.0, %v580
  %v582 = vpop.f32.mrb[0].mxu0
  %v583 = vpop.f32.mrb[0].mxu0
  %v584 = vadd.f32 0.0, %v583
  %v585 = vpop.f32.mrb[0].mxu0
  %586 = vmatprep.mubr.bf16.mxu0 0
  %587 = vmatmul.mubr.bf16.gmra.mrb[0].mxu0 %v461
  %v588 = vpop.f32.mrb[0].mxu0
  %v589 = vadd.f32 0.0, %v588
  %v590 = vpop.f32.mrb[0].mxu0
  %v591 = vpop.f32.mrb[0].mxu0
  %v592 = vadd.f32 0.0, %v591
  %v593 = vpop.f32.mrb[0].mxu0
  %594 = vmatprep.mubr.bf16.mxu0 0
  %595 = vmatmul.mubr.bf16.gmra.mrb[0].mxu0 %v462
  %v596 = vpop.f32.mrb[0].mxu0
  %v597 = vadd.f32 0.0, %v596
  %v598 = vpop.f32.mrb[0].mxu0
  %v599 = vpop.f32.mrb[0].mxu0
  %v600 = vadd.f32 0.0, %v599
  %v601 = vpop.f32.mrb[0].mxu0
  %602 = vmatprep.mubr.bf16.mxu0 0
  %603 = vmatmul.mubr.bf16.gmra.mrb[0].mxu0 %v463
  %v604 = vpop.f32.mrb[0].mxu0
  %v605 = vadd.f32 0.0, %v604
  %v606 = vpop.f32.mrb[0].mxu0
  %v607 = vpop.f32.mrb[0].mxu0
  %v608 = vadd.f32 0.0, %v607
  %v609 = vpop.f32.mrb[0].mxu0
  %610 = vmatprep.mubr.bf16.mxu0 0
  %611 = vmatmul.mubr.bf16.gmra.mrb[0].mxu0 %v464
  %v612 = vpop.f32.mrb[0].mxu0
  %v613 = vadd.f32 0.0, %v612
  %v614 = vpop.f32.mrb[0].mxu0
  %v615 = vpop.f32.mrb[0].mxu0
  %v616 = vadd.f32 0.0, %v615
  %v617 = vpop.f32.mrb[0].mxu0
  %618 = vmatprep.mubr.bf16.mxu0 0
  %619 = vmatmul.mubr.bf16.gmra.mrb[0].mxu0 %v465
  %v620 = vpop.f32.mrb[0].mxu0
  %v621 = vadd.f32 0.0, %v620
  %v622 = vpop.f32.mrb[0].mxu0
  %v623 = vpop.f32.mrb[0].mxu0
  %v624 = vadd.f32 0.0, %v623
  %v625 = vpop.f32.mrb[0].mxu0
  %626 = vdwg.mxu0
  %v627 = vpack.c.bf16 %v568, %v565
  %v628 = vpack.c.bf16 %v576, %v573
  %v629 = vpack.c.bf16 %v584, %v581
  %v630 = vpack.c.bf16 %v592, %v589
  %v631 = vpack.c.bf16 %v600, %v597
  %v632 = vpack.c.bf16 %v608, %v605
  %v633 = vpack.c.bf16 %v616, %v613
  %v634 = vpack.c.bf16 %v624, %v621
  %v635 = vld [vmem:[%s5] sm:$0x1]
  %v637 = vlaneseq
  %v638 = vshrl.u32 %v637, 7
  %v639 = vsub.s32 0, %v638
  %v640 = vrot.slane %v635, %v639
  %642 = vmatprep.subr.bf16.mxu0 0
  %643 = vmatpush1.bf16.msra.mxu0 %v627
  %644 = vmatprep.subr.bf16.mxu0 0
  %645 = vmatpush1.bf16.msra.mxu0 %v628
  %646 = vmatprep.subr.bf16.mxu0 0
  %647 = vmatpush1.bf16.msra.mxu0 %v629
  %648 = vmatprep.subr.bf16.mxu0 0
  %649 = vmatpush1.bf16.msra.mxu0 %v630
  %650 = vmatprep.subr.bf16.mxu0 0
  %651 = vmatpush1.bf16.msra.mxu0 %v631
  %652 = vmatprep.subr.bf16.mxu0 0
  %653 = vmatpush1.bf16.msra.mxu0 %v632
  %654 = vmatprep.subr.bf16.mxu0 0
  %655 = vmatpush1.bf16.msra.mxu0 %v633
  %656 = vmatprep.subr.bf16.mxu0 0
  %657 = vmatpush1.bf16.msra.mxu0 %v634
  %658 = vmatprep.subr.bf16.mxu0 0
  %659 = vmatpush1.bf16.msra.mxu0 0
  %660 = vmatprep.subr.bf16.mxu0 0
  %661 = vmatpush1.bf16.msra.mxu0 0
  %662 = vmatprep.subr.bf16.mxu0 0
  %663 = vmatpush1.bf16.msra.mxu0 0
  %664 = vmatprep.subr.bf16.mxu0 0
  %665 = vmatpush1.bf16.msra.mxu0 0
  %666 = vmatprep.subr.bf16.mxu0 0
  %667 = vmatpush1.bf16.msra.mxu0 0
  %668 = vmatprep.subr.bf16.mxu0 0
  %669 = vmatpush1.bf16.msra.mxu0 0
  %670 = vmatprep.subr.bf16.mxu0 0
  %671 = vmatpush1.bf16.msra.mxu0 0
  %672 = vmatprep.subr.bf16.mxu0 0
  %673 = vmatpush1.bf16.msra.mxu0 0
  %674 = vmatprep.mubr.bf16.mxu0 0
  %675 = vmatmul.mubr.bf16.gmra.mrb[0].mxu0 %v330
  %v676 = vpop.f32.mrb[0].mxu0
  %v677 = vadd.f32 %v640, %v676
  %v678 = vpop.f32.mrb[0].mxu0
  %v679 = vpop.f32.mrb[0].mxu0
  %v680 = vadd.f32 %v640, %v679
  %v681 = vpop.f32.mrb[0].mxu0
  %682 = vmatprep.mubr.bf16.mxu0 0
  %683 = vmatmul.mubr.bf16.gmra.mrb[0].mxu0 %v331
  %v684 = vpop.f32.mrb[0].mxu0
  %v685 = vadd.f32 %v640, %v684
  %v686 = vpop.f32.mrb[0].mxu0
  %v687 = vpop.f32.mrb[0].mxu0
  %v688 = vadd.f32 %v640, %v687
  %v689 = vpop.f32.mrb[0].mxu0
  %690 = vmatprep.mubr.bf16.mxu0 0
  %691 = vmatmul.mubr.bf16.gmra.mrb[0].mxu0 %v332
  %v692 = vpop.f32.mrb[0].mxu0
  %v693 = vadd.f32 %v640, %v692
  %v694 = vpop.f32.mrb[0].mxu0
  %v695 = vpop.f32.mrb[0].mxu0
  %v696 = vadd.f32 %v640, %v695
  %v697 = vpop.f32.mrb[0].mxu0
  %698 = vmatprep.mubr.bf16.mxu0 0
  %699 = vmatmul.mubr.bf16.gmra.mrb[0].mxu0 %v333
  %v700 = vpop.f32.mrb[0].mxu0
  %v701 = vadd.f32 %v640, %v700
  %v702 = vpop.f32.mrb[0].mxu0
  %v703 = vpop.f32.mrb[0].mxu0
  %v704 = vadd.f32 %v640, %v703
  %v705 = vpop.f32.mrb[0].mxu0
  %706 = vmatprep.mubr.bf16.mxu0 0
  %707 = vmatmul.mubr.bf16.gmra.mrb[0].mxu0 %v334
  %v708 = vpop.f32.mrb[0].mxu0
  %v709 = vadd.f32 %v640, %v708
  %v710 = vpop.f32.mrb[0].mxu0
  %v711 = vpop.f32.mrb[0].mxu0
  %v712 = vadd.f32 %v640, %v711
  %v713 = vpop.f32.mrb[0].mxu0
  %714 = vmatprep.mubr.bf16.mxu0 0
  %715 = vmatmul.mubr.bf16.gmra.mrb[0].mxu0 %v335
  %v716 = vpop.f32.mrb[0].mxu0
  %v717 = vadd.f32 %v640, %v716
  %v718 = vpop.f32.mrb[0].mxu0
  %v719 = vpop.f32.mrb[0].mxu0
  %v720 = vadd.f32 %v640, %v719
  %v721 = vpop.f32.mrb[0].mxu0
  %722 = vmatprep.mubr.bf16.mxu0 0
  %723 = vmatmul.mubr.bf16.gmra.mrb[0].mxu0 %v336
  %v724 = vpop.f32.mrb[0].mxu0
  %v725 = vadd.f32 %v640, %v724
  %v726 = vpop.f32.mrb[0].mxu0
  %v727 = vpop.f32.mrb[0].mxu0
  %v728 = vadd.f32 %v640, %v727
  %v729 = vpop.f32.mrb[0].mxu0
  %730 = vmatprep.mubr.bf16.mxu0 0
  %731 = vmatmul.mubr.bf16.gmra.mrb[0].mxu0 %v337
  %v732 = vpop.f32.mrb[0].mxu0
  %v733 = vadd.f32 %v640, %v732
  %v734 = vpop.f32.mrb[0].mxu0
  %v735 = vpop.f32.mrb[0].mxu0
  %v736 = vadd.f32 %v640, %v735
  %v737 = vpop.f32.mrb[0].mxu0
  %738 = vdwg.mxu0
  %v739 = vmax.f32 %v677, 0.0
  %v740 = vmax.f32 %v680, 0.0
  %v741 = vmax.f32 %v685, 0.0
  %v742 = vmax.f32 %v688, 0.0
  %v743 = vmax.f32 %v693, 0.0
  %v744 = vmax.f32 %v696, 0.0
  %v745 = vmax.f32 %v701, 0.0
  %v746 = vmax.f32 %v704, 0.0
  %v747 = vmax.f32 %v709, 0.0
  %v748 = vmax.f32 %v712, 0.0
  %v749 = vmax.f32 %v717, 0.0
  %v750 = vmax.f32 %v720, 0.0
  %v751 = vmax.f32 %v725, 0.0
  %v752 = vmax.f32 %v728, 0.0
  %v753 = vmax.f32 %v733, 0.0
  %v754 = vmax.f32 %v736, 0.0
  %v755 = vpack.c.bf16 %v740, %v739
  %v756 = vpack.c.bf16 %v742, %v741
  %v757 = vpack.c.bf16 %v744, %v743
  %v758 = vpack.c.bf16 %v746, %v745
  %v759 = vpack.c.bf16 %v748, %v747
  %v760 = vpack.c.bf16 %v750, %v749
  %v761 = vpack.c.bf16 %v752, %v751
  %v762 = vpack.c.bf16 %v754, %v753
  %v763 = vld [vmem:[%s6] sm:$0xf]
  %v764 = vld [vmem:[%s6 + $0x4] sm:$0xf]
  %v765 = vld [vmem:[%s6 + $0x8] sm:$0xf]
  %v766 = vld [vmem:[%s6 + $0xc] sm:$0xf]
  %v767 = vld [vmem:[%s6 + $0x10] sm:$0xf]
  %v768 = vld [vmem:[%s6 + $0x14] sm:$0xf]
  %v769 = vld [vmem:[%s6 + $0x18] sm:$0xf]
  %v770 = vld [vmem:[%s6 + $0x1c] sm:$0xf]
  %v771 = vld [vmem:[%s6 + $0x20] sm:$0xf]
  %v772 = vld [vmem:[%s6 + $0x24] sm:$0xf]
  %v773 = vld [vmem:[%s6 + $0x28] sm:$0xf]
  %v774 = vld [vmem:[%s6 + $0x2c] sm:$0xf]
  %v775 = vld [vmem:[%s6 + $0x30] sm:$0xf]
  %v776 = vld [vmem:[%s6 + $0x34] sm:$0xf]
  %v777 = vld [vmem:[%s6 + $0x38] sm:$0xf]
  %v778 = vld [vmem:[%s6 + $0x3c] sm:$0xf]
  %v795 = vunpack.c.l.b16 %v763
  %v796 = vunpack.c.l.b16 %v764
  %v797 = vunpack.c.l.b16 %v765
  %v798 = vunpack.c.l.b16 %v766
  %v799 = vunpack.c.l.b16 %v767
  %v800 = vunpack.c.l.b16 %v768
  %v801 = vunpack.c.l.b16 %v769
  %v802 = vunpack.c.l.b16 %v770
  %v803 = vunpack.c.l.b16 %v771
  %v804 = vunpack.c.l.b16 %v772
  %v805 = vunpack.c.l.b16 %v773
  %v806 = vunpack.c.l.b16 %v774
  %v807 = vunpack.c.l.b16 %v775
  %v808 = vunpack.c.l.b16 %v776
  %v809 = vunpack.c.l.b16 %v777
  %v810 = vunpack.c.l.b16 %v778
  %v811 = vpack.c.b16 %v796, %v795
  %v812 = vpack.c.b16 %v798, %v797
  %v813 = vpack.c.b16 %v800, %v799
  %v814 = vpack.c.b16 %v802, %v801
  %v815 = vpack.c.b16 %v804, %v803
  %v816 = vpack.c.b16 %v806, %v805
  %v817 = vpack.c.b16 %v808, %v807
  %v818 = vpack.c.b16 %v810, %v809
  %827 = vmatprep.subr.bf16.mxu0 0
  %828 = vmatpush1.bf16.msra.mxu0 %v811
  %829 = vmatprep.subr.bf16.mxu0 0
  %830 = vmatpush1.bf16.msra.mxu0 %v812
  %831 = vmatprep.subr.bf16.mxu0 0
  %832 = vmatpush1.bf16.msra.mxu0 %v813
  %833 = vmatprep.subr.bf16.mxu0 0
  %834 = vmatpush1.bf16.msra.mxu0 %v814
  %835 = vmatprep.subr.bf16.mxu0 0
  %836 = vmatpush1.bf16.msra.mxu0 %v815
  %837 = vmatprep.subr.bf16.mxu0 0
  %838 = vmatpush1.bf16.msra.mxu0 %v816
  %839 = vmatprep.subr.bf16.mxu0 0
  %840 = vmatpush1.bf16.msra.mxu0 %v817
  %841 = vmatprep.subr.bf16.mxu0 0
  %842 = vmatpush1.bf16.msra.mxu0 %v818
  %843 = vmatprep.subr.bf16.mxu0 0
  %844 = vmatpush1.bf16.msra.mxu0 0
  %845 = vmatprep.subr.bf16.mxu0 0
  %846 = vmatpush1.bf16.msra.mxu0 0
  %847 = vmatprep.subr.bf16.mxu0 0
  %848 = vmatpush1.bf16.msra.mxu0 0
  %849 = vmatprep.subr.bf16.mxu0 0
  %850 = vmatpush1.bf16.msra.mxu0 0
  %851 = vmatprep.subr.bf16.mxu0 0
  %852 = vmatpush1.bf16.msra.mxu0 0
  %853 = vmatprep.subr.bf16.mxu0 0
  %854 = vmatpush1.bf16.msra.mxu0 0
  %855 = vmatprep.subr.bf16.mxu0 0
  %856 = vmatpush1.bf16.msra.mxu0 0
  %857 = vmatprep.subr.bf16.mxu0 0
  %858 = vmatpush1.bf16.msra.mxu0 0
  %859 = vmatprep.mubr.bf16.mxu0 0
  %860 = vmatmul.mubr.bf16.gmra.mrb[0].mxu0 %v755
  %v861 = vpop.f32.mrb[0].mxu0
  %v862 = vadd.f32 0.0, %v861
  %v863 = vpop.f32.mrb[0].mxu0
  %v864 = vpop.f32.mrb[0].mxu0
  %v865 = vadd.f32 0.0, %v864
  %v866 = vpop.f32.mrb[0].mxu0
  %867 = vmatprep.mubr.bf16.mxu0 0
  %868 = vmatmul.mubr.bf16.gmra.mrb[0].mxu0 %v756
  %v869 = vpop.f32.mrb[0].mxu0
  %v870 = vadd.f32 0.0, %v869
  %v871 = vpop.f32.mrb[0].mxu0
  %v872 = vpop.f32.mrb[0].mxu0
  %v873 = vadd.f32 0.0, %v872
  %v874 = vpop.f32.mrb[0].mxu0
  %875 = vmatprep.mubr.bf16.mxu0 0
  %876 = vmatmul.mubr.bf16.gmra.mrb[0].mxu0 %v757
  %v877 = vpop.f32.mrb[0].mxu0
  %v878 = vadd.f32 0.0, %v877
  %v879 = vpop.f32.mrb[0].mxu0
  %v880 = vpop.f32.mrb[0].mxu0
  %v881 = vadd.f32 0.0, %v880
  %v882 = vpop.f32.mrb[0].mxu0
  %883 = vmatprep.mubr.bf16.mxu0 0
  %884 = vmatmul.mubr.bf16.gmra.mrb[0].mxu0 %v758
  %v885 = vpop.f32.mrb[0].mxu0
  %v886 = vadd.f32 0.0, %v885
  %v887 = vpop.f32.mrb[0].mxu0
  %v888 = vpop.f32.mrb[0].mxu0
  %v889 = vadd.f32 0.0, %v888
  %v890 = vpop.f32.mrb[0].mxu0
  %891 = vmatprep.mubr.bf16.mxu0 0
  %892 = vmatmul.mubr.bf16.gmra.mrb[0].mxu0 %v759
  %v893 = vpop.f32.mrb[0].mxu0
  %v894 = vadd.f32 0.0, %v893
  %v895 = vpop.f32.mrb[0].mxu0
  %v896 = vpop.f32.mrb[0].mxu0
  %v897 = vadd.f32 0.0, %v896
  %v898 = vpop.f32.mrb[0].mxu0
  %899 = vmatprep.mubr.bf16.mxu0 0
  %900 = vmatmul.mubr.bf16.gmra.mrb[0].mxu0 %v760
  %v901 = vpop.f32.mrb[0].mxu0
  %v902 = vadd.f32 0.0, %v901
  %v903 = vpop.f32.mrb[0].mxu0
  %v904 = vpop.f32.mrb[0].mxu0
  %v905 = vadd.f32 0.0, %v904
  %v906 = vpop.f32.mrb[0].mxu0
  %907 = vmatprep.mubr.bf16.mxu0 0
  %908 = vmatmul.mubr.bf16.gmra.mrb[0].mxu0 %v761
  %v909 = vpop.f32.mrb[0].mxu0
  %v910 = vadd.f32 0.0, %v909
  %v911 = vpop.f32.mrb[0].mxu0
  %v912 = vpop.f32.mrb[0].mxu0
  %v913 = vadd.f32 0.0, %v912
  %v914 = vpop.f32.mrb[0].mxu0
  %915 = vmatprep.mubr.bf16.mxu0 0
  %916 = vmatmul.mubr.bf16.gmra.mrb[0].mxu0 %v762
  %v917 = vpop.f32.mrb[0].mxu0
  %v918 = vadd.f32 0.0, %v917
  %v919 = vpop.f32.mrb[0].mxu0
  %v920 = vpop.f32.mrb[0].mxu0
  %v921 = vadd.f32 0.0, %v920
  %v922 = vpop.f32.mrb[0].mxu0
  %923 = vdwg.mxu0
  %v924 = vld [vmem:[%s8] sm:$0xff]
  %v925 = vld [vmem:[%s7] sm:$0xff]
  %926 = vmatprep.subr.mxu0 0.0
  %927 = vmatpush1.msra.mxu0 %v862
  %928 = vmatprep.subr.mxu0 0.0
  %929 = vmatpush1.msra.mxu0 %v865
  %930 = vmatprep.subr.mxu0 0.0
  %931 = vmatpush1.msra.mxu0 %v870
  %932 = vmatprep.subr.mxu0 0.0
  %933 = vmatpush1.msra.mxu0 %v873
  %934 = vmatprep.subr.mxu0 0.0
  %935 = vmatpush1.msra.mxu0 %v878
  %936 = vmatprep.subr.mxu0 0.0
  %937 = vmatpush1.msra.mxu0 %v881
  %938 = vmatprep.subr.mxu0 0.0
  %939 = vmatpush1.msra.mxu0 %v886
  %940 = vmatprep.subr.mxu0 0.0
  %941 = vmatpush1.msra.mxu0 %v889
  %942 = vmatprep.subr.mxu0 0.0
  %943 = vmatpush1.msra.mxu0 %v894
  %944 = vmatprep.subr.mxu0 0.0
  %945 = vmatpush1.msra.mxu0 %v897
  %946 = vmatprep.subr.mxu0 0.0
  %947 = vmatpush1.msra.mxu0 %v902
  %948 = vmatprep.subr.mxu0 0.0
  %949 = vmatpush1.msra.mxu0 %v905
  %950 = vmatprep.subr.mxu0 0.0
  %951 = vmatpush1.msra.mxu0 %v910
  %952 = vmatprep.subr.mxu0 0.0
  %953 = vmatpush1.msra.mxu0 %v913
  %954 = vmatprep.subr.mxu0 0.0
  %955 = vmatpush1.msra.mxu0 %v918
  %956 = vmatprep.subr.mxu0 0.0
  %957 = vmatpush1.msra.mxu0 %v921
  %958 = vmatprep.subr.mxu0 0.0
  %959 = vmatpush1.msra.mxu0 0.0
  %960 = vmatprep.subr.mxu0 0.0
  %961 = vmatpush1.msra.mxu0 0.0
  %962 = vmatprep.subr.mxu0 0.0
  %963 = vmatpush1.msra.mxu0 0.0
  %964 = vmatprep.subr.mxu0 0.0
  %965 = vmatpush1.msra.mxu0 0.0
  %966 = vmatprep.subr.mxu0 0.0
  %967 = vmatpush1.msra.mxu0 0.0
  %968 = vmatprep.subr.mxu0 0.0
  %969 = vmatpush1.msra.mxu0 0.0
  %970 = vmatprep.subr.mxu0 0.0
  %971 = vmatpush1.msra.mxu0 0.0
  %972 = vmatprep.subr.mxu0 0.0
  %973 = vmatpush1.msra.mxu0 0.0
  %974 = vmatprep.subr.mxu0 0.0
  %975 = vmatpush1.msra.mxu0 0.0
  %976 = vmatprep.subr.mxu0 0.0
  %977 = vmatpush1.msra.mxu0 0.0
  %978 = vmatprep.subr.mxu0 0.0
  %979 = vmatpush1.msra.mxu0 0.0
  %980 = vmatprep.subr.mxu0 0.0
  %981 = vmatpush1.msra.mxu0 0.0
  %982 = vmatprep.subr.mxu0 0.0
  %983 = vmatpush1.msra.mxu0 0.0
  %984 = vmatprep.subr.mxu0 0.0
  %985 = vmatpush1.msra.mxu0 0.0
  %986 = vmatprep.subr.mxu0 0.0
  %987 = vmatpush1.msra.mxu0 0.0
  %988 = vmatprep.subr.mxu0 0.0
  %989 = vmatpush1.msra.mxu0 0.0
  %990 = vmatprep.mubr.f32.mxu0 0.0
  %991 = vmatmul.mubr.f32.gmra.mrb[0].mxu0 %v924
  %v992 = vpop.f32.mrb[0].mxu0
  %v993 = vadd.f32 %v925, %v992
  %v994 = vpop.f32.mrb[0].mxu0
  %995 = vdwg.mxu0
  %v996 = vld [vmem:[%s9] sm:$0xff]
  %v997 = vld [vmem:[%s9 + $0x8] sm:$0xff]
  %v998 = vld [vmem:[%s9 + $0x10] sm:$0xff]
  %v999 = vld [vmem:[%s9 + $0x18] sm:$0xff]
  %v1000 = vld [vmem:[%s9 + $0x20] sm:$0xff]
  %v1001 = vld [vmem:[%s9 + $0x28] sm:$0xff]
  %v1002 = vld [vmem:[%s9 + $0x30] sm:$0xff]
  %v1003 = vld [vmem:[%s9 + $0x38] sm:$0xff]
  %v1004 = vld [vmem:[%s9 + $0x40] sm:$0xff]
  %v1005 = vld [vmem:[%s9 + $0x48] sm:$0xff]
  %v1006 = vld [vmem:[%s9 + $0x50] sm:$0xff]
  %v1007 = vld [vmem:[%s9 + $0x58] sm:$0xff]
  %v1008 = vld [vmem:[%s9 + $0x60] sm:$0xff]
  %v1009 = vld [vmem:[%s9 + $0x68] sm:$0xff]
  %v1010 = vld [vmem:[%s9 + $0x70] sm:$0xff]
  %v1011 = vld [vmem:[%s9 + $0x78] sm:$0xff]
  %v1012 = vld [vmem:[%s10] sm:$0x1]
  %v1014 = vlaneseq
  %v1015 = vshrl.u32 %v1014, 7
  %v1016 = vsub.s32 0, %v1015
  %v1017 = vrot.slane %v1012, %v1016
  %1019 = vmatprep.subr.mxu0 0.0
  %1020 = vmatpush1.msra.mxu0 %v996
  %1021 = vmatprep.subr.mxu0 0.0
  %1022 = vmatpush1.msra.mxu0 %v997
  %1023 = vmatprep.subr.mxu0 0.0
  %1024 = vmatpush1.msra.mxu0 %v998
  %1025 = vmatprep.subr.mxu0 0.0
  %1026 = vmatpush1.msra.mxu0 %v999
  %1027 = vmatprep.subr.mxu0 0.0
  %1028 = vmatpush1.msra.mxu0 %v1000
  %1029 = vmatprep.subr.mxu0 0.0
  %1030 = vmatpush1.msra.mxu0 %v1001
  %1031 = vmatprep.subr.mxu0 0.0
  %1032 = vmatpush1.msra.mxu0 %v1002
  %1033 = vmatprep.subr.mxu0 0.0
  %1034 = vmatpush1.msra.mxu0 %v1003
  %1035 = vmatprep.subr.mxu0 0.0
  %1036 = vmatpush1.msra.mxu0 %v1004
  %1037 = vmatprep.subr.mxu0 0.0
  %1038 = vmatpush1.msra.mxu0 %v1005
  %1039 = vmatprep.subr.mxu0 0.0
  %1040 = vmatpush1.msra.mxu0 %v1006
  %1041 = vmatprep.subr.mxu0 0.0
  %1042 = vmatpush1.msra.mxu0 %v1007
  %1043 = vmatprep.subr.mxu0 0.0
  %1044 = vmatpush1.msra.mxu0 %v1008
  %1045 = vmatprep.subr.mxu0 0.0
  %1046 = vmatpush1.msra.mxu0 %v1009
  %1047 = vmatprep.subr.mxu0 0.0
  %1048 = vmatpush1.msra.mxu0 %v1010
  %1049 = vmatprep.subr.mxu0 0.0
  %1050 = vmatpush1.msra.mxu0 %v1011
  %1051 = vmatprep.subr.mxu0 0.0
  %1052 = vmatpush1.msra.mxu0 0.0
  %1053 = vmatprep.subr.mxu0 0.0
  %1054 = vmatpush1.msra.mxu0 0.0
  %1055 = vmatprep.subr.mxu0 0.0
  %1056 = vmatpush1.msra.mxu0 0.0
  %1057 = vmatprep.subr.mxu0 0.0
  %1058 = vmatpush1.msra.mxu0 0.0
  %1059 = vmatprep.subr.mxu0 0.0
  %1060 = vmatpush1.msra.mxu0 0.0
  %1061 = vmatprep.subr.mxu0 0.0
  %1062 = vmatpush1.msra.mxu0 0.0
  %1063 = vmatprep.subr.mxu0 0.0
  %1064 = vmatpush1.msra.mxu0 0.0
  %1065 = vmatprep.subr.mxu0 0.0
  %1066 = vmatpush1.msra.mxu0 0.0
  %1067 = vmatprep.subr.mxu0 0.0
  %1068 = vmatpush1.msra.mxu0 0.0
  %1069 = vmatprep.subr.mxu0 0.0
  %1070 = vmatpush1.msra.mxu0 0.0
  %1071 = vmatprep.subr.mxu0 0.0
  %1072 = vmatpush1.msra.mxu0 0.0
  %1073 = vmatprep.subr.mxu0 0.0
  %1074 = vmatpush1.msra.mxu0 0.0
  %1075 = vmatprep.subr.mxu0 0.0
  %1076 = vmatpush1.msra.mxu0 0.0
  %1077 = vmatprep.subr.mxu0 0.0
  %1078 = vmatpush1.msra.mxu0 0.0
  %1079 = vmatprep.subr.mxu0 0.0
  %1080 = vmatpush1.msra.mxu0 0.0
  %1081 = vmatprep.subr.mxu0 0.0
  %1082 = vmatpush1.msra.mxu0 0.0
  %1083 = vmatprep.mubr.f32.mxu0 0.0
  %1084 = vmatmul.mubr.f32.gmra.mrb[0].mxu0 %v993
  %v1085 = vpop.f32.mrb[0].mxu0
  %v1086 = vadd.f32 %v1017, %v1085
  %v1087 = vpop.f32.mrb[0].mxu0
  %1088 = vdwg.mxu0
  %1089 = vst [vmem:[%s11] sm:$0xff] %v1086
  // Predicated region
  $region76: #{gcn_forward.1} parent=0 // pred_check
    _
  $region77: #{gcn_forward.1} parent=0 // pred_check_branch
    %1091 = sbr.rel (0) target = $region79
  $region78: #{gcn_forward.1} parent=0 // pred_region
    _
  $region79: #{gcn_forward.1} parent=0 // pred_fallthru
    _
  // Predicated region
  $region80: #{gcn_forward.1} parent=0 // pred_check
    _
  $region81: #{gcn_forward.1} parent=0 // pred_check_branch
    %1093 = sbr.rel (0) target = $region83
  $region82: #{gcn_forward.1} parent=0 // pred_region
    _
  $region83: #{gcn_forward.1} parent=0 // pred_fallthru
    _
  %1094 = vsyncmov [#allocation3]
  %s1095 = vpop.sfrf %1094
  %p1096 = scmp.eq.s32.totalorder %s1095, 0
  %p1097 = pneg %p1096
  %1099 = shalt.err (%p1097)

</llo_original>
